<compile_context>
chip_gen: v5e
topology: v5e:2x2
jax: 0.10.0
libtpu: 0.0.40
codegen_flags: <defaults>
</compile_context>

<pallas_src>
import jax
import jax.numpy as jnp
from jax.experimental import pallas as pl
from jax.experimental.pallas import tpu as pltpu

H1 = 100
H2 = 100
O_DIM = 1
LN_EPS = 1e-5
LEAKY_SLOPE = 0.01          # nn.LeakyReLU default negative_slope

MAX_TB = 4096               # max rows per grid step
TB_ALIGN = 128              # lane alignment (output tile's last dim is the batch)


def _leaky_relu(x):
    return jnp.where(x > 0, x, LEAKY_SLOPE * x)


def rt_nw_kernel(x_ref,
                 w1_ref, b1_ref, g1_ref, be1_ref,
                 w2_ref, b2_ref,
                 w3g_ref, c3_ref,
                 o_ref):
    # Layer 1: bf16 MXU matmul (cast done in-kernel; x streamed as f32), f32 epilogue.
    x = x_ref[...].astype(jnp.bfloat16)
    h = jnp.dot(x, w1_ref[...], preferred_element_type=jnp.float32) + b1_ref[...]
    h = _leaky_relu(h)

    # LayerNorm 1 (full affine).  Dropout = identity (eval).
    mu = jnp.mean(h, axis=-1, keepdims=True)
    hc = h - mu
    var = jnp.mean(hc * hc, axis=-1, keepdims=True)
    h = hc * jax.lax.rsqrt(var + LN_EPS) * g1_ref[...] + be1_ref[...]

    # Layer 2: bf16 MXU matmul, f32 epilogue.
    h = jnp.dot(h.astype(jnp.bfloat16), w2_ref[...],
                preferred_element_type=jnp.float32) + b2_ref[...]
    h = _leaky_relu(h)

    # LayerNorm 2 with its affine folded into the output head.  Dropout = identity.
    mu2 = jnp.mean(h, axis=-1, keepdims=True)
    hc2 = h - mu2
    var2 = jnp.mean(hc2 * hc2, axis=-1, keepdims=True)
    hn2 = hc2 * jax.lax.rsqrt(var2 + LN_EPS)                 # (tb, H2), f32

    # Head: (1, H2) x (tb, H2) contracting H2 -> lane-dense (1, tb) row.
    out_row = jax.lax.dot_general(
        w3g_ref[...], hn2,
        dimension_numbers=(((1,), (1,)), ((), ())),
        preferred_element_type=jnp.float32)                  # (1, tb)
    o_ref[...] = (out_row + c3_ref[0]).astype(o_ref.dtype)


def _round_up(n, m):
    return ((n + m - 1) // m) * m


@jax.jit
def rt_nw_forward(x, params):
    """x: (B, ip_dim) float32 -> (B, 1) float32."""
    (w1, b1, g1, be1, w2, b2, g2, be2, w3, b3) = params
    B, ip_dim = x.shape

    # Batch tile: lane-aligned (batch is the output lane axis), big enough to amortize
    # per-step overhead; keep >=2 grid steps when possible so v7x's two TCs both work.
    b_align = _round_up(max(B, 1), TB_ALIGN)
    tb = min(MAX_TB, b_align)
    if tb == b_align and tb >= 2 * TB_ALIGN:
        tb = _round_up(tb // 2, TB_ALIGN)
    n_blocks = -(-B // tb)
    b_pad = n_blocks * tb

    # Tiny param prep (weights in bf16 for the MXU; LN2 affine folded into the head).
    w1b = w1.astype(jnp.bfloat16)
    w2b = w2.astype(jnp.bfloat16)
    w3g = (g2 * w3.reshape(1, H2)).astype(jnp.float32)        # (1, H2) = gamma2 * w3
    c3 = (be2 @ w3 + b3).reshape(O_DIM).astype(jnp.float32)   # scalar: beta2 . w3 + b3

    def resident(arr):
        # Constant block index => stays VMEM-resident, no re-DMA per grid step.
        return pl.BlockSpec(arr.shape, lambda i: (0, 0))

    out_row = pl.pallas_call(
        rt_nw_kernel,
        out_shape=jax.ShapeDtypeStruct((O_DIM, b_pad), jnp.float32),
        grid=(n_blocks,),
        in_specs=[
            # x streamed per tile as f32 (cast in-kernel); ragged tail handled by
            # Pallas boundary-block padding -- padded rows never mix into valid rows.
            pl.BlockSpec((tb, ip_dim), lambda i: (i, 0)),
            resident(w1b), resident(b1), resident(g1), resident(be1),
            resident(w2b), resident(b2),
            resident(w3g),
            pl.BlockSpec(memory_space=pltpu.MemorySpace.SMEM),   # folded head bias
        ],
        out_specs=pl.BlockSpec((O_DIM, tb), lambda i: (0, i)),   # lane-dense output
        compiler_params=pltpu.CompilerParams(
            dimension_semantics=("parallel",),
            vmem_limit_bytes=32 * 1024 * 1024),
    )(x, w1b, b1, g1, be1, w2b, b2, w3g, c3)

    return out_row[0, :B].reshape(B, O_DIM)


def init_params(key, ip_dim):
    """Deterministic init mimicking PyTorch defaults (uniform +-1/sqrt(fan_in))."""
    ks = jax.random.split(key, 6)

    def lin(kw, kb, fan_in, fan_out):
        bound = 1.0 / jnp.sqrt(jnp.float32(fan_in))
        w = jax.random.uniform(kw, (fan_in, fan_out), jnp.float32, -bound, bound)
        b = jax.random.uniform(kb, (1, fan_out), jnp.float32, -bound, bound)
        return w, b

    w1, b1 = lin(ks[0], ks[1], ip_dim, H1)
    w2, b2 = lin(ks[2], ks[3], H1, H2)
    w3, b3 = lin(ks[4], ks[5], H2, O_DIM)

    g1 = jnp.ones((1, H1), jnp.float32)
    be1 = jnp.zeros((1, H1), jnp.float32)
    g2 = jnp.ones((1, H2), jnp.float32)
    be2 = jnp.zeros((1, H2), jnp.float32)

    return (w1, b1, g1, be1, w2, b2, g2, be2, w3, b3)


def _layer_norm_ref(x, gamma, beta):
    mean = jnp.mean(x, axis=-1, keepdims=True)
    var = jnp.mean((x - mean) ** 2, axis=-1, keepdims=True)
    return (x - mean) * jax.lax.rsqrt(var + LN_EPS) * gamma + beta


def reference_forward(x, params):
    """Pure-JAX reference with the same bf16 matmul inputs / f32 epilogue."""
    (w1, b1, g1, be1, w2, b2, g2, be2, w3, b3) = params
    h = jnp.dot(x.astype(jnp.bfloat16), w1.astype(jnp.bfloat16),
                preferred_element_type=jnp.float32) + b1
    h = _layer_norm_ref(_leaky_relu(h), g1, be1)
    h = jnp.dot(h.astype(jnp.bfloat16), w2.astype(jnp.bfloat16),
                preferred_element_type=jnp.float32) + b2
    h = _layer_norm_ref(_leaky_relu(h), g2, be2)
    return h @ w3 + b3


if __name__ == "__main__":
    ip_dim = 32
    key = jax.random.PRNGKey(0)
    kx, kp, kx2 = jax.random.split(key, 3)
    params = init_params(kp, ip_dim)

    # Small batch (single grid step, boundary-padded input block).
    x_small = jax.random.normal(kx, (8, ip_dim), jnp.float32)
    out_small = jax.block_until_ready(rt_nw_forward(x_small, params))
    ref_small = reference_forward(x_small, params)
    assert out_small.shape == (8, O_DIM)
    assert jnp.allclose(out_small, ref_small, atol=2e-3, rtol=2e-3), "mismatch (B=8)"

    # Larger ragged batch (multi-step grid, ragged tail, >=2 steps for v7x).
    x_big = jax.random.normal(kx2, (300, ip_dim), jnp.float32)
    out_big = jax.block_until_ready(rt_nw_forward(x_big, params))
    ref_big = reference_forward(x_big, params)
    assert out_big.shape == (300, O_DIM)
    assert jnp.allclose(out_big, ref_big, atol=2e-3, rtol=2e-3), "mismatch (B=300)"

    print("KERNEL_OK")
</pallas_src>

<mosaic_0001>
module attributes {stable_mosaic.version = 11 : i64} {
  func.func @rt_nw_kernel(%arg0: i32, %arg1: memref<128x32xf32, #tpu.memory_space<vmem>>, %arg2: memref<32x100xbf16, #tpu.memory_space<vmem>>, %arg3: memref<1x100xf32, #tpu.memory_space<vmem>>, %arg4: memref<1x100xf32, #tpu.memory_space<vmem>>, %arg5: memref<1x100xf32, #tpu.memory_space<vmem>>, %arg6: memref<100x100xbf16, #tpu.memory_space<vmem>>, %arg7: memref<1x100xf32, #tpu.memory_space<vmem>>, %arg8: memref<1x100xf32, #tpu.memory_space<vmem>>, %arg9: memref<1xf32, #tpu.memory_space<smem>>, %arg10: memref<1x128xf32, #tpu.memory_space<vmem>>) attributes {dimension_semantics = [#tpu.dimension_semantics<parallel>], iteration_bounds = array<i64: 1>, scalar_prefetch = 0 : i64, scratch_operands = 0 : i64, tpu.core_type = #tpu.core_type<tc>, window_params = [{transform_indices = @transform_0, window_bounds = array<i64: 128, 32>}, {pipeline_mode = #tpu.pipeline_mode<synchronous>, transform_indices = @transform_1, window_bounds = array<i64: 32, 100>}, {pipeline_mode = #tpu.pipeline_mode<synchronous>, transform_indices = @transform_2, window_bounds = array<i64: 1, 100>}, {pipeline_mode = #tpu.pipeline_mode<synchronous>, transform_indices = @transform_3, window_bounds = array<i64: 1, 100>}, {pipeline_mode = #tpu.pipeline_mode<synchronous>, transform_indices = @transform_4, window_bounds = array<i64: 1, 100>}, {pipeline_mode = #tpu.pipeline_mode<synchronous>, transform_indices = @transform_5, window_bounds = array<i64: 100, 100>}, {pipeline_mode = #tpu.pipeline_mode<synchronous>, transform_indices = @transform_6, window_bounds = array<i64: 1, 100>}, {pipeline_mode = #tpu.pipeline_mode<synchronous>, transform_indices = @transform_7, window_bounds = array<i64: 1, 100>}, {transform_indices = @transform_8, window_bounds = array<i64: 1>}, {transform_indices = @transform_9, window_bounds = array<i64: 1, 128>}]} {
    %c0 = arith.constant 0 : index
    %c0_0 = arith.constant 0 : index
    %0 = vector.load %arg1[%c0, %c0_0] : memref<128x32xf32, #tpu.memory_space<vmem>>, vector<128x32xf32>
    %1 = arith.truncf %0 : vector<128x32xf32> to vector<128x32xbf16>
    %c0_1 = arith.constant 0 : index
    %c0_2 = arith.constant 0 : index
    %2 = vector.load %arg2[%c0_1, %c0_2] : memref<32x100xbf16, #tpu.memory_space<vmem>>, vector<32x100xbf16>
    %cst = arith.constant dense<0.000000e+00> : vector<128x100xf32>
    %3 = tpu.matmul %1, %2, %cst {dimension_numbers = #tpu.dot_dimension_numbers<[1], [0], [0], [1], [0, 0, 1, 1], [], []>} : vector<128x32xbf16>, vector<32x100xbf16>, vector<128x100xf32> -> vector<128x100xf32>
    %c0_3 = arith.constant 0 : index
    %c0_4 = arith.constant 0 : index
    %4 = vector.load %arg3[%c0_3, %c0_4] : memref<1x100xf32, #tpu.memory_space<vmem>>, vector<1x100xf32>
    %5 = vector.broadcast %4 : vector<1x100xf32> to vector<128x100xf32>
    %6 = arith.addf %3, %5 : vector<128x100xf32>
    %cst_5 = arith.constant 0.000000e+00 : f32
    %7 = vector.broadcast %cst_5 : f32 to vector<128x100xf32>
    %8 = arith.cmpf ogt, %6, %7 : vector<128x100xf32>
    %cst_6 = arith.constant 0.00999999977 : f32
    %9 = vector.broadcast %cst_6 : f32 to vector<128x100xf32>
    %10 = arith.mulf %9, %6 : vector<128x100xf32>
    %11 = arith.select %8, %6, %10 : vector<128x100xi1>, vector<128x100xf32>
    %cst_7 = arith.constant dense<0.000000e+00> : vector<128xf32>
    %12 = vector.multi_reduction <add>, %11, %cst_7 [1] : vector<128x100xf32> to vector<128xf32>
    %13 = vector.shape_cast %12 : vector<128xf32> to vector<128x1xf32>
    %cst_8 = arith.constant 1.000000e+02 : f32
    %14 = vector.broadcast %cst_8 : f32 to vector<128x1xf32>
    %15 = arith.divf %13, %14 : vector<128x1xf32>
    %16 = vector.broadcast %15 : vector<128x1xf32> to vector<128x100xf32>
    %17 = arith.subf %11, %16 : vector<128x100xf32>
    %18 = arith.mulf %17, %17 : vector<128x100xf32>
    %cst_9 = arith.constant dense<0.000000e+00> : vector<128xf32>
    %19 = vector.multi_reduction <add>, %18, %cst_9 [1] : vector<128x100xf32> to vector<128xf32>
    %20 = vector.shape_cast %19 : vector<128xf32> to vector<128x1xf32>
    %cst_10 = arith.constant 1.000000e+02 : f32
    %21 = vector.broadcast %cst_10 : f32 to vector<128x1xf32>
    %22 = arith.divf %20, %21 : vector<128x1xf32>
    %cst_11 = arith.constant 9.99999974E-6 : f32
    %23 = vector.broadcast %cst_11 : f32 to vector<128x1xf32>
    %24 = arith.addf %22, %23 : vector<128x1xf32>
    %25 = math.rsqrt %24 : vector<128x1xf32>
    %26 = vector.broadcast %25 : vector<128x1xf32> to vector<128x100xf32>
    %27 = arith.mulf %17, %26 : vector<128x100xf32>
    %c0_12 = arith.constant 0 : index
    %c0_13 = arith.constant 0 : index
    %28 = vector.load %arg4[%c0_12, %c0_13] : memref<1x100xf32, #tpu.memory_space<vmem>>, vector<1x100xf32>
    %29 = vector.broadcast %28 : vector<1x100xf32> to vector<128x100xf32>
    %30 = arith.mulf %27, %29 : vector<128x100xf32>
    %c0_14 = arith.constant 0 : index
    %c0_15 = arith.constant 0 : index
    %31 = vector.load %arg5[%c0_14, %c0_15] : memref<1x100xf32, #tpu.memory_space<vmem>>, vector<1x100xf32>
    %32 = vector.broadcast %31 : vector<1x100xf32> to vector<128x100xf32>
    %33 = arith.addf %30, %32 : vector<128x100xf32>
    %34 = arith.truncf %33 : vector<128x100xf32> to vector<128x100xbf16>
    %c0_16 = arith.constant 0 : index
    %c0_17 = arith.constant 0 : index
    %35 = vector.load %arg6[%c0_16, %c0_17] : memref<100x100xbf16, #tpu.memory_space<vmem>>, vector<100x100xbf16>
    %cst_18 = arith.constant dense<0.000000e+00> : vector<128x100xf32>
    %36 = tpu.matmul %34, %35, %cst_18 {dimension_numbers = #tpu.dot_dimension_numbers<[1], [0], [0], [1], [0, 0, 1, 1], [], []>} : vector<128x100xbf16>, vector<100x100xbf16>, vector<128x100xf32> -> vector<128x100xf32>
    %c0_19 = arith.constant 0 : index
    %c0_20 = arith.constant 0 : index
    %37 = vector.load %arg7[%c0_19, %c0_20] : memref<1x100xf32, #tpu.memory_space<vmem>>, vector<1x100xf32>
    %38 = vector.broadcast %37 : vector<1x100xf32> to vector<128x100xf32>
    %39 = arith.addf %36, %38 : vector<128x100xf32>
    %cst_21 = arith.constant 0.000000e+00 : f32
    %40 = vector.broadcast %cst_21 : f32 to vector<128x100xf32>
    %41 = arith.cmpf ogt, %39, %40 : vector<128x100xf32>
    %cst_22 = arith.constant 0.00999999977 : f32
    %42 = vector.broadcast %cst_22 : f32 to vector<128x100xf32>
    %43 = arith.mulf %42, %39 : vector<128x100xf32>
    %44 = arith.select %41, %39, %43 : vector<128x100xi1>, vector<128x100xf32>
    %cst_23 = arith.constant dense<0.000000e+00> : vector<128xf32>
    %45 = vector.multi_reduction <add>, %44, %cst_23 [1] : vector<128x100xf32> to vector<128xf32>
    %46 = vector.shape_cast %45 : vector<128xf32> to vector<128x1xf32>
    %cst_24 = arith.constant 1.000000e+02 : f32
    %47 = vector.broadcast %cst_24 : f32 to vector<128x1xf32>
    %48 = arith.divf %46, %47 : vector<128x1xf32>
    %49 = vector.broadcast %48 : vector<128x1xf32> to vector<128x100xf32>
    %50 = arith.subf %44, %49 : vector<128x100xf32>
    %51 = arith.mulf %50, %50 : vector<128x100xf32>
    %cst_25 = arith.constant dense<0.000000e+00> : vector<128xf32>
    %52 = vector.multi_reduction <add>, %51, %cst_25 [1] : vector<128x100xf32> to vector<128xf32>
    %53 = vector.shape_cast %52 : vector<128xf32> to vector<128x1xf32>
    %cst_26 = arith.constant 1.000000e+02 : f32
    %54 = vector.broadcast %cst_26 : f32 to vector<128x1xf32>
    %55 = arith.divf %53, %54 : vector<128x1xf32>
    %cst_27 = arith.constant 9.99999974E-6 : f32
    %56 = vector.broadcast %cst_27 : f32 to vector<128x1xf32>
    %57 = arith.addf %55, %56 : vector<128x1xf32>
    %58 = math.rsqrt %57 : vector<128x1xf32>
    %59 = vector.broadcast %58 : vector<128x1xf32> to vector<128x100xf32>
    %60 = arith.mulf %50, %59 : vector<128x100xf32>
    %c0_28 = arith.constant 0 : index
    %c0_29 = arith.constant 0 : index
    %61 = vector.load %arg8[%c0_28, %c0_29] : memref<1x100xf32, #tpu.memory_space<vmem>>, vector<1x100xf32>
    %cst_30 = arith.constant dense<0.000000e+00> : vector<1x128xf32>
    %62 = tpu.matmul %61, %60, %cst_30 {dimension_numbers = #tpu.dot_dimension_numbers<[1], [1], [0], [0], [0, 0, 1, 0], [], []>} : vector<1x100xf32>, vector<128x100xf32>, vector<1x128xf32> -> vector<1x128xf32>
    %c0_31 = arith.constant 0 : index
    %63 = memref.load %arg9[%c0_31] : memref<1xf32, #tpu.memory_space<smem>>
    %64 = vector.broadcast %63 : f32 to vector<1x128xf32>
    %65 = arith.addf %62, %64 : vector<1x128xf32>
    %c0_32 = arith.constant 0 : index
    %c0_33 = arith.constant 0 : index
    %66 = vector.load %arg10[%c0_32, %c0_33] : memref<1x128xf32, #tpu.memory_space<vmem>>, vector<1x128xf32>
    tpu.vector_store %arg10[%c0_32, %c0_33], %65 {strides = array<i32>} : memref<1x128xf32, #tpu.memory_space<vmem>>, vector<1x128xf32>,
    return
  }
  func.func @transform_0(%arg0: i32) -> (i32, i32) {
    %c0_i32 = arith.constant 0 : i32
    %c0_i32_0 = arith.constant 0 : i32
    return %arg0, %c0_i32 : i32, i32
  }
  func.func @transform_1(%arg0: i32) -> (i32, i32) {
    %c0_i32 = arith.constant 0 : i32
    %c0_i32_0 = arith.constant 0 : i32
    %c0_i32_1 = arith.constant 0 : i32
    return %c0_i32, %c0_i32_0 : i32, i32
  }
  func.func @transform_2(%arg0: i32) -> (i32, i32) {
    %c0_i32 = arith.constant 0 : i32
    %c0_i32_0 = arith.constant 0 : i32
    %c0_i32_1 = arith.constant 0 : i32
    return %c0_i32, %c0_i32_0 : i32, i32
  }
  func.func @transform_3(%arg0: i32) -> (i32, i32) {
    %c0_i32 = arith.constant 0 : i32
    %c0_i32_0 = arith.constant 0 : i32
    %c0_i32_1 = arith.constant 0 : i32
    return %c0_i32, %c0_i32_0 : i32, i32
  }
  func.func @transform_4(%arg0: i32) -> (i32, i32) {
    %c0_i32 = arith.constant 0 : i32
    %c0_i32_0 = arith.constant 0 : i32
    %c0_i32_1 = arith.constant 0 : i32
    return %c0_i32, %c0_i32_0 : i32, i32
  }
  func.func @transform_5(%arg0: i32) -> (i32, i32) {
    %c0_i32 = arith.constant 0 : i32
    %c0_i32_0 = arith.constant 0 : i32
    %c0_i32_1 = arith.constant 0 : i32
    return %c0_i32, %c0_i32_0 : i32, i32
  }
  func.func @transform_6(%arg0: i32) -> (i32, i32) {
    %c0_i32 = arith.constant 0 : i32
    %c0_i32_0 = arith.constant 0 : i32
    %c0_i32_1 = arith.constant 0 : i32
    return %c0_i32, %c0_i32_0 : i32, i32
  }
  func.func @transform_7(%arg0: i32) -> (i32, i32) {
    %c0_i32 = arith.constant 0 : i32
    %c0_i32_0 = arith.constant 0 : i32
    %c0_i32_1 = arith.constant 0 : i32
    return %c0_i32, %c0_i32_0 : i32, i32
  }
  func.func @transform_8(%arg0: i32) -> i32 {
    %c0_i32 = arith.constant 0 : i32
    %c0_i32_0 = arith.constant 0 : i32
    return %c0_i32 : i32
  }
  func.func @transform_9(%arg0: i32) -> (i32, i32) {
    %c0_i32 = arith.constant 0 : i32
    %c0_i32_0 = arith.constant 0 : i32
    return %c0_i32, %arg0 : i32, i32
  }
}

</mosaic_0001>

<llo_original>
// kernel: rt_nw_forward.1
$region0: #{rt_nw_forward.1}
  #allocation0 [shape = 'u32[]', space=smem, size = 0x4, offset = 0x4, fixed_abs, tag = 'smem constant byte address 0x4 - core index']
  #allocation1 [shape = 'u32[72,128]{1,0:T(1,128)}', space=vmem, size = 0x9000, scoped, tag = 'internal scratch']
  #allocation2 [shape = 'f32[1]{0:T(128)S(6)}', space=smem, size = 0x200, scoped, tag = 'scoped memory for rt_nw_forward.1']
  %s0 = inlined_call_operand.vmem [shape: f32[8,32], index: 0, kind: input, shape index: {}]
  %s1 = inlined_call_operand.vmem [shape: bf16[32,100], index: 1, kind: input, shape index: {}]
  %s2 = inlined_call_operand.vmem [shape: f32[1,100], index: 2, kind: input, shape index: {}]
  %s3 = inlined_call_operand.vmem [shape: f32[1,100], index: 3, kind: input, shape index: {}]
  %s4 = inlined_call_operand.vmem [shape: f32[1,100], index: 4, kind: input, shape index: {}]
  %s5 = inlined_call_operand.vmem [shape: bf16[100,100], index: 5, kind: input, shape index: {}]
  %s6 = inlined_call_operand.vmem [shape: f32[1,100], index: 6, kind: input, shape index: {}]
  %s7 = inlined_call_operand.vmem [shape: f32[1,100], index: 7, kind: input, shape index: {}]
  %s8 = inlined_call_operand.<no memory space> [shape: f32[1], index: 8, kind: input, shape index: {}]
  %s9 = inlined_call_operand.vmem [shape: f32[1,128], index: 9, kind: output, shape index: {}]
  %s10 = sld [smem:[#allocation0]]
  $region46: #{rt_nw_forward.1} parent=0
    _
  %s12 = ssub.s32 1, %s10
  %s13 = scalar_select 0, %s12, %s10
  %14 = sst [smem:[#allocation2]] %s8
  // Predicated region
  $region2: #{rt_nw_forward.1} parent=0 // pred_check
    _
  $region3: #{rt_nw_forward.1} parent=0 // pred_check_branch
    %16 = sbr.rel (0) target = $region5
  $region4: #{rt_nw_forward.1} parent=0 // pred_region
    _
  $region5: #{rt_nw_forward.1} parent=0 // pred_fallthru
    _
  // Predicated region
  $region6: #{rt_nw_forward.1} parent=0 // pred_check
    _
  $region7: #{rt_nw_forward.1} parent=0 // pred_check_branch
    %18 = sbr.rel (0) target = $region9
  $region8: #{rt_nw_forward.1} parent=0 // pred_region
    _
  $region9: #{rt_nw_forward.1} parent=0 // pred_fallthru
    _
  // Predicated region
  $region10: #{rt_nw_forward.1} parent=0 // pred_check
    _
  $region11: #{rt_nw_forward.1} parent=0 // pred_check_branch
    %20 = sbr.rel (0) target = $region13
  $region12: #{rt_nw_forward.1} parent=0 // pred_region
    _
  $region13: #{rt_nw_forward.1} parent=0 // pred_fallthru
    _
  // Predicated region
  $region14: #{rt_nw_forward.1} parent=0 // pred_check
    _
  $region15: #{rt_nw_forward.1} parent=0 // pred_check_branch
    %22 = sbr.rel (0) target = $region17
  $region16: #{rt_nw_forward.1} parent=0 // pred_region
    _
  $region17: #{rt_nw_forward.1} parent=0 // pred_fallthru
    _
  // Predicated region
  $region18: #{rt_nw_forward.1} parent=0 // pred_check
    _
  $region19: #{rt_nw_forward.1} parent=0 // pred_check_branch
    %24 = sbr.rel (0) target = $region21
  $region20: #{rt_nw_forward.1} parent=0 // pred_region
    _
  $region21: #{rt_nw_forward.1} parent=0 // pred_fallthru
    _
  // Predicated region
  $region22: #{rt_nw_forward.1} parent=0 // pred_check
    _
  $region23: #{rt_nw_forward.1} parent=0 // pred_check_branch
    %26 = sbr.rel (0) target = $region25
  $region24: #{rt_nw_forward.1} parent=0 // pred_region
    _
  $region25: #{rt_nw_forward.1} parent=0 // pred_fallthru
    _
  // Predicated region
  $region26: #{rt_nw_forward.1} parent=0 // pred_check
    _
  $region27: #{rt_nw_forward.1} parent=0 // pred_check_branch
    %28 = sbr.rel (0) target = $region29
  $region28: #{rt_nw_forward.1} parent=0 // pred_region
    _
  $region29: #{rt_nw_forward.1} parent=0 // pred_fallthru
    _
  // Predicated region
  $region30: #{rt_nw_forward.1} parent=0 // pred_check
    _
  $region31: #{rt_nw_forward.1} parent=0 // pred_check_branch
    %30 = sbr.rel (0) target = $region33
  $region32: #{rt_nw_forward.1} parent=0 // pred_region
    _
  $region33: #{rt_nw_forward.1} parent=0 // pred_fallthru
    _
  // Predicated region
  $region34: #{rt_nw_forward.1} parent=0 // pred_check
    _
  $region35: #{rt_nw_forward.1} parent=0 // pred_check_branch
    %32 = sbr.rel (0) target = $region37
  $region36: #{rt_nw_forward.1} parent=0 // pred_region
    _
  $region37: #{rt_nw_forward.1} parent=0 // pred_fallthru
    _
  %v34 = vld [vmem:[%s0] sm:$0xff]
  %v35 = vld [vmem:[%s0 + $0x8] sm:$0xff]
  %v36 = vld [vmem:[%s0 + $0x10] sm:$0xff]
  %v37 = vld [vmem:[%s0 + $0x18] sm:$0xff]
  %v38 = vld [vmem:[%s0 + $0x20] sm:$0xff]
  %v39 = vld [vmem:[%s0 + $0x28] sm:$0xff]
  %v40 = vld [vmem:[%s0 + $0x30] sm:$0xff]
  %v41 = vld [vmem:[%s0 + $0x38] sm:$0xff]
  %v42 = vld [vmem:[%s0 + $0x40] sm:$0xff]
  %v43 = vld [vmem:[%s0 + $0x48] sm:$0xff]
  %v44 = vld [vmem:[%s0 + $0x50] sm:$0xff]
  %v45 = vld [vmem:[%s0 + $0x58] sm:$0xff]
  %v46 = vld [vmem:[%s0 + $0x60] sm:$0xff]
  %v47 = vld [vmem:[%s0 + $0x68] sm:$0xff]
  %v48 = vld [vmem:[%s0 + $0x70] sm:$0xff]
  %v49 = vld [vmem:[%s0 + $0x78] sm:$0xff]
  %v50 = vpack.c.bf16 %v35, %v34
  %v51 = vpack.c.bf16 %v37, %v36
  %v52 = vpack.c.bf16 %v39, %v38
  %v53 = vpack.c.bf16 %v41, %v40
  %v54 = vpack.c.bf16 %v43, %v42
  %v55 = vpack.c.bf16 %v45, %v44
  %v56 = vpack.c.bf16 %v47, %v46
  %v57 = vpack.c.bf16 %v49, %v48
  %v58 = vld [vmem:[%s1] sm:$0xf]
  %v59 = vld [vmem:[%s1 + $0x4] sm:$0xf]
  %v60 = vld [vmem:[%s1 + $0x8] sm:$0xf]
  %v61 = vld [vmem:[%s1 + $0xc] sm:$0xf]
  %v62 = vld [vmem:[%s2] sm:$0x1]
  %v64 = vperm.slane %v62, 0
  %v70 = vunpack.c.l.b16 %v58
  %v71 = vunpack.c.l.b16 %v59
  %v72 = vunpack.c.l.b16 %v60
  %v73 = vunpack.c.l.b16 %v61
  %v74 = vpack.c.b16 %v71, %v70
  %v75 = vpack.c.b16 %v73, %v72
  %vm78 = vcmask 261120
  %v80 = vsel %vm78, %v50, 0
  %v83 = vsel %vm78, %v51, 0
  %v86 = vsel %vm78, %v52, 0
  %v89 = vsel %vm78, %v53, 0
  %v92 = vsel %vm78, %v54, 0
  %v95 = vsel %vm78, %v55, 0
  %v98 = vsel %vm78, %v56, 0
  %v101 = vsel %vm78, %v57, 0
  %103 = vmatpush.bf16.msra.mxu0 0
  %104 = vmatpush.bf16.msra.mxu0 0
  %105 = vmatpush.bf16.msra.mxu0 0
  %106 = vmatpush.bf16.msra.mxu0 0
  %107 = vmatpush.bf16.msra.mxu0 0
  %108 = vmatpush.bf16.msra.mxu0 0
  %109 = vmatpush.bf16.msra.mxu0 %v75
  %110 = vmatpush.bf16.msra.mxu0 %v74
  %111 = vmatmul.bf16.gmra.mxu0 %v80
  %v112 = vpop.f32.mrf.mxu0
  %v113 = vadd.f32 %v64, %v112
  %v114 = vpop.f32.mrf.mxu0
  %v115 = vadd.f32 %v64, %v114
  %116 = vmatmul.bf16.gmra.mxu0 %v83
  %v117 = vpop.f32.mrf.mxu0
  %v118 = vadd.f32 %v64, %v117
  %v119 = vpop.f32.mrf.mxu0
  %v120 = vadd.f32 %v64, %v119
  %121 = vmatmul.bf16.gmra.mxu0 %v86
  %v122 = vpop.f32.mrf.mxu0
  %v123 = vadd.f32 %v64, %v122
  %v124 = vpop.f32.mrf.mxu0
  %v125 = vadd.f32 %v64, %v124
  %126 = vmatmul.bf16.gmra.mxu0 %v89
  %v127 = vpop.f32.mrf.mxu0
  %v128 = vadd.f32 %v64, %v127
  %v129 = vpop.f32.mrf.mxu0
  %v130 = vadd.f32 %v64, %v129
  %131 = vmatmul.bf16.gmra.mxu0 %v92
  %v132 = vpop.f32.mrf.mxu0
  %v133 = vadd.f32 %v64, %v132
  %v134 = vpop.f32.mrf.mxu0
  %v135 = vadd.f32 %v64, %v134
  %136 = vmatmul.bf16.gmra.mxu0 %v95
  %v137 = vpop.f32.mrf.mxu0
  %v138 = vadd.f32 %v64, %v137
  %v139 = vpop.f32.mrf.mxu0
  %v140 = vadd.f32 %v64, %v139
  %141 = vmatmul.bf16.gmra.mxu0 %v98
  %v142 = vpop.f32.mrf.mxu0
  %v143 = vadd.f32 %v64, %v142
  %v144 = vpop.f32.mrf.mxu0
  %v145 = vadd.f32 %v64, %v144
  %146 = vmatmul.bf16.gmra.mxu0 %v101
  %v147 = vpop.f32.mrf.mxu0
  %v148 = vadd.f32 %v64, %v147
  %v149 = vpop.f32.mrf.mxu0
  %v150 = vadd.f32 %v64, %v149
  %151 = vdwg.mxu0
  %vm152 = vcmp.gt.f32.partialorder %v113, 0.0
  %vm153 = vcmp.gt.f32.partialorder %v115, 0.0
  %vm154 = vcmp.gt.f32.partialorder %v118, 0.0
  %vm155 = vcmp.gt.f32.partialorder %v120, 0.0
  %vm156 = vcmp.gt.f32.partialorder %v123, 0.0
  %vm157 = vcmp.gt.f32.partialorder %v125, 0.0
  %vm158 = vcmp.gt.f32.partialorder %v128, 0.0
  %vm159 = vcmp.gt.f32.partialorder %v130, 0.0
  %vm160 = vcmp.gt.f32.partialorder %v133, 0.0
  %vm161 = vcmp.gt.f32.partialorder %v135, 0.0
  %vm162 = vcmp.gt.f32.partialorder %v138, 0.0
  %vm163 = vcmp.gt.f32.partialorder %v140, 0.0
  %vm164 = vcmp.gt.f32.partialorder %v143, 0.0
  %vm165 = vcmp.gt.f32.partialorder %v145, 0.0
  %vm166 = vcmp.gt.f32.partialorder %v148, 0.0
  %vm167 = vcmp.gt.f32.partialorder %v150, 0.0
  %v168 = vmul.f32 %v113, 0.01
  %v169 = vmul.f32 %v115, 0.01
  %v170 = vmul.f32 %v118, 0.01
  %v171 = vmul.f32 %v120, 0.01
  %v172 = vmul.f32 %v123, 0.01
  %v173 = vmul.f32 %v125, 0.01
  %v174 = vmul.f32 %v128, 0.01
  %v175 = vmul.f32 %v130, 0.01
  %v176 = vmul.f32 %v133, 0.01
  %v177 = vmul.f32 %v135, 0.01
  %v178 = vmul.f32 %v138, 0.01
  %v179 = vmul.f32 %v140, 0.01
  %v180 = vmul.f32 %v143, 0.01
  %v181 = vmul.f32 %v145, 0.01
  %v182 = vmul.f32 %v148, 0.01
  %v183 = vmul.f32 %v150, 0.01
  %v184 = vsel %vm152, %v113, %v168
  %v185 = vsel %vm153, %v115, %v169
  %v186 = vsel %vm154, %v118, %v170
  %v187 = vsel %vm155, %v120, %v171
  %v188 = vsel %vm156, %v123, %v172
  %v189 = vsel %vm157, %v125, %v173
  %v190 = vsel %vm158, %v128, %v174
  %v191 = vsel %vm159, %v130, %v175
  %v192 = vsel %vm160, %v133, %v176
  %v193 = vsel %vm161, %v135, %v177
  %v194 = vsel %vm162, %v138, %v178
  %v195 = vsel %vm163, %v140, %v179
  %v196 = vsel %vm164, %v143, %v180
  %v197 = vsel %vm165, %v145, %v181
  %v198 = vsel %vm166, %v148, %v182
  %v199 = vsel %vm167, %v150, %v183
  %vm200 = vcmask 818176
  %v201 = vsel %vm200, %v184, 0.0
  %202 = vadd.xlane.f32.xlu0 %v201
  %v203 = vpop.xlane.xlu0 %202
  %v204 = vsel %vm200, %v185, 0.0
  %205 = vadd.xlane.f32.xlu0 %v204
  %v206 = vpop.xlane.xlu0 %205
  %v207 = vsel %vm200, %v186, 0.0
  %208 = vadd.xlane.f32.xlu0 %v207
  %v209 = vpop.xlane.xlu0 %208
  %v210 = vsel %vm200, %v187, 0.0
  %211 = vadd.xlane.f32.xlu0 %v210
  %v212 = vpop.xlane.xlu0 %211
  %v213 = vsel %vm200, %v188, 0.0
  %214 = vadd.xlane.f32.xlu0 %v213
  %v215 = vpop.xlane.xlu0 %214
  %v216 = vsel %vm200, %v189, 0.0
  %217 = vadd.xlane.f32.xlu0 %v216
  %v218 = vpop.xlane.xlu0 %217
  %v219 = vsel %vm200, %v190, 0.0
  %220 = vadd.xlane.f32.xlu0 %v219
  %v221 = vpop.xlane.xlu0 %220
  %v222 = vsel %vm200, %v191, 0.0
  %223 = vadd.xlane.f32.xlu0 %v222
  %v224 = vpop.xlane.xlu0 %223
  %v225 = vsel %vm200, %v192, 0.0
  %226 = vadd.xlane.f32.xlu0 %v225
  %v227 = vpop.xlane.xlu0 %226
  %v228 = vsel %vm200, %v193, 0.0
  %229 = vadd.xlane.f32.xlu0 %v228
  %v230 = vpop.xlane.xlu0 %229
  %v231 = vsel %vm200, %v194, 0.0
  %232 = vadd.xlane.f32.xlu0 %v231
  %v233 = vpop.xlane.xlu0 %232
  %v234 = vsel %vm200, %v195, 0.0
  %235 = vadd.xlane.f32.xlu0 %v234
  %v236 = vpop.xlane.xlu0 %235
  %v237 = vsel %vm200, %v196, 0.0
  %238 = vadd.xlane.f32.xlu0 %v237
  %v239 = vpop.xlane.xlu0 %238
  %v240 = vsel %vm200, %v197, 0.0
  %241 = vadd.xlane.f32.xlu0 %v240
  %v242 = vpop.xlane.xlu0 %241
  %v243 = vsel %vm200, %v198, 0.0
  %244 = vadd.xlane.f32.xlu0 %v243
  %v245 = vpop.xlane.xlu0 %244
  %v246 = vsel %vm200, %v199, 0.0
  %247 = vadd.xlane.f32.xlu0 %v246
  %v248 = vpop.xlane.xlu0 %247
  %v249 = vrcp.pop 100.0
  %v250 = vmul.f32 100.0, %v249
  %v251 = vsub.f32 1.0, %v250
  %v252 = vmul.f32 %v249, %v251
  %v253 = vadd.f32 %v249, %v252
  %vm254 = vweird.f32 %v249
  %v255 = vsel %vm254, %v249, %v253
  %v256 = vmul.f32 %v203, %v255
  %v257 = vmul.f32 %v206, %v255
  %v258 = vmul.f32 %v209, %v255
  %v259 = vmul.f32 %v212, %v255
  %v260 = vmul.f32 %v215, %v255
  %v261 = vmul.f32 %v218, %v255
  %v262 = vmul.f32 %v221, %v255
  %v263 = vmul.f32 %v224, %v255
  %v264 = vmul.f32 %v227, %v255
  %v265 = vmul.f32 %v230, %v255
  %v266 = vmul.f32 %v233, %v255
  %v267 = vmul.f32 %v236, %v255
  %v268 = vmul.f32 %v239, %v255
  %v269 = vmul.f32 %v242, %v255
  %v270 = vmul.f32 %v245, %v255
  %v271 = vmul.f32 %v248, %v255
  %v272 = vsub.f32 %v184, %v256
  %v273 = vsub.f32 %v185, %v257
  %v274 = vsub.f32 %v186, %v258
  %v275 = vsub.f32 %v187, %v259
  %v276 = vsub.f32 %v188, %v260
  %v277 = vsub.f32 %v189, %v261
  %v278 = vsub.f32 %v190, %v262
  %v279 = vsub.f32 %v191, %v263
  %v280 = vsub.f32 %v192, %v264
  %v281 = vsub.f32 %v193, %v265
  %v282 = vsub.f32 %v194, %v266
  %v283 = vsub.f32 %v195, %v267
  %v284 = vsub.f32 %v196, %v268
  %v285 = vsub.f32 %v197, %v269
  %v286 = vsub.f32 %v198, %v270
  %v287 = vsub.f32 %v199, %v271
  %v288 = vmul.f32 %v272, %v272
  %v289 = vmul.f32 %v273, %v273
  %v290 = vmul.f32 %v274, %v274
  %v291 = vmul.f32 %v275, %v275
  %v292 = vmul.f32 %v276, %v276
  %v293 = vmul.f32 %v277, %v277
  %v294 = vmul.f32 %v278, %v278
  %v295 = vmul.f32 %v279, %v279
  %v296 = vmul.f32 %v280, %v280
  %v297 = vmul.f32 %v281, %v281
  %v298 = vmul.f32 %v282, %v282
  %v299 = vmul.f32 %v283, %v283
  %v300 = vmul.f32 %v284, %v284
  %v301 = vmul.f32 %v285, %v285
  %v302 = vmul.f32 %v286, %v286
  %v303 = vmul.f32 %v287, %v287
  %v304 = vsel %vm200, %v288, 0.0
  %305 = vadd.xlane.f32.xlu0 %v304
  %v306 = vpop.xlane.xlu0 %305
  %v307 = vsel %vm200, %v289, 0.0
  %308 = vadd.xlane.f32.xlu0 %v307
  %v309 = vpop.xlane.xlu0 %308
  %v310 = vsel %vm200, %v290, 0.0
  %311 = vadd.xlane.f32.xlu0 %v310
  %v312 = vpop.xlane.xlu0 %311
  %v313 = vsel %vm200, %v291, 0.0
  %314 = vadd.xlane.f32.xlu0 %v313
  %v315 = vpop.xlane.xlu0 %314
  %v316 = vsel %vm200, %v292, 0.0
  %317 = vadd.xlane.f32.xlu0 %v316
  %v318 = vpop.xlane.xlu0 %317
  %v319 = vsel %vm200, %v293, 0.0
  %320 = vadd.xlane.f32.xlu0 %v319
  %v321 = vpop.xlane.xlu0 %320
  %v322 = vsel %vm200, %v294, 0.0
  %323 = vadd.xlane.f32.xlu0 %v322
  %v324 = vpop.xlane.xlu0 %323
  %v325 = vsel %vm200, %v295, 0.0
  %326 = vadd.xlane.f32.xlu0 %v325
  %v327 = vpop.xlane.xlu0 %326
  %v328 = vsel %vm200, %v296, 0.0
  %329 = vadd.xlane.f32.xlu0 %v328
  %v330 = vpop.xlane.xlu0 %329
  %v331 = vsel %vm200, %v297, 0.0
  %332 = vadd.xlane.f32.xlu0 %v331
  %v333 = vpop.xlane.xlu0 %332
  %v334 = vsel %vm200, %v298, 0.0
  %335 = vadd.xlane.f32.xlu0 %v334
  %v336 = vpop.xlane.xlu0 %335
  %v337 = vsel %vm200, %v299, 0.0
  %338 = vadd.xlane.f32.xlu0 %v337
  %v339 = vpop.xlane.xlu0 %338
  %v340 = vsel %vm200, %v300, 0.0
  %341 = vadd.xlane.f32.xlu0 %v340
  %v342 = vpop.xlane.xlu0 %341
  %v343 = vsel %vm200, %v301, 0.0
  %344 = vadd.xlane.f32.xlu0 %v343
  %v345 = vpop.xlane.xlu0 %344
  %v346 = vsel %vm200, %v302, 0.0
  %347 = vadd.xlane.f32.xlu0 %v346
  %v348 = vpop.xlane.xlu0 %347
  %v349 = vsel %vm200, %v303, 0.0
  %350 = vadd.xlane.f32.xlu0 %v349
  %v351 = vpop.xlane.xlu0 %350
  %v352 = vmul.f32 %v306, %v255
  %v353 = vmul.f32 %v309, %v255
  %v354 = vmul.f32 %v312, %v255
  %v355 = vmul.f32 %v315, %v255
  %v356 = vmul.f32 %v318, %v255
  %v357 = vmul.f32 %v321, %v255
  %v358 = vmul.f32 %v324, %v255
  %v359 = vmul.f32 %v327, %v255
  %v360 = vmul.f32 %v330, %v255
  %v361 = vmul.f32 %v333, %v255
  %v362 = vmul.f32 %v336, %v255
  %v363 = vmul.f32 %v339, %v255
  %v364 = vmul.f32 %v342, %v255
  %v365 = vmul.f32 %v345, %v255
  %v366 = vmul.f32 %v348, %v255
  %v367 = vmul.f32 %v351, %v255
  %v368 = vadd.f32 %v352, 1e-05
  %v369 = vadd.f32 %v353, 1e-05
  %v370 = vadd.f32 %v354, 1e-05
  %v371 = vadd.f32 %v355, 1e-05
  %v372 = vadd.f32 %v356, 1e-05
  %v373 = vadd.f32 %v357, 1e-05
  %v374 = vadd.f32 %v358, 1e-05
  %v375 = vadd.f32 %v359, 1e-05
  %v376 = vadd.f32 %v360, 1e-05
  %v377 = vadd.f32 %v361, 1e-05
  %v378 = vadd.f32 %v362, 1e-05
  %v379 = vadd.f32 %v363, 1e-05
  %v380 = vadd.f32 %v364, 1e-05
  %v381 = vadd.f32 %v365, 1e-05
  %v382 = vadd.f32 %v366, 1e-05
  %v383 = vadd.f32 %v367, 1e-05
  %v384 = vrsqrt.pop %v368
  %v385 = vmul.f32 %v384, %v368
  %v386 = vmul.f32 %v385, %v384
  %v387 = vmul.f32 0.5, %v386
  %v388 = vsub.f32 1.5, %v387
  %v389 = vmul.f32 %v384, %v388
  %vm390 = vweird.f32 %v368
  %vm391 = vweird.f32 %v384
  %vm392 = vmor %vm390, %vm391
  %v393 = vsel %vm392, %v384, %v389
  %v394 = vrsqrt.pop %v369
  %v395 = vmul.f32 %v394, %v369
  %v396 = vmul.f32 %v395, %v394
  %v397 = vmul.f32 0.5, %v396
  %v398 = vsub.f32 1.5, %v397
  %v399 = vmul.f32 %v394, %v398
  %vm400 = vweird.f32 %v369
  %vm401 = vweird.f32 %v394
  %vm402 = vmor %vm400, %vm401
  %v403 = vsel %vm402, %v394, %v399
  %v404 = vrsqrt.pop %v370
  %v405 = vmul.f32 %v404, %v370
  %v406 = vmul.f32 %v405, %v404
  %v407 = vmul.f32 0.5, %v406
  %v408 = vsub.f32 1.5, %v407
  %v409 = vmul.f32 %v404, %v408
  %vm410 = vweird.f32 %v370
  %vm411 = vweird.f32 %v404
  %vm412 = vmor %vm410, %vm411
  %v413 = vsel %vm412, %v404, %v409
  %v414 = vrsqrt.pop %v371
  %v415 = vmul.f32 %v414, %v371
  %v416 = vmul.f32 %v415, %v414
  %v417 = vmul.f32 0.5, %v416
  %v418 = vsub.f32 1.5, %v417
  %v419 = vmul.f32 %v414, %v418
  %vm420 = vweird.f32 %v371
  %vm421 = vweird.f32 %v414
  %vm422 = vmor %vm420, %vm421
  %v423 = vsel %vm422, %v414, %v419
  %v424 = vrsqrt.pop %v372
  %v425 = vmul.f32 %v424, %v372
  %v426 = vmul.f32 %v425, %v424
  %v427 = vmul.f32 0.5, %v426
  %v428 = vsub.f32 1.5, %v427
  %v429 = vmul.f32 %v424, %v428
  %vm430 = vweird.f32 %v372
  %vm431 = vweird.f32 %v424
  %vm432 = vmor %vm430, %vm431
  %v433 = vsel %vm432, %v424, %v429
  %v434 = vrsqrt.pop %v373
  %v435 = vmul.f32 %v434, %v373
  %v436 = vmul.f32 %v435, %v434
  %v437 = vmul.f32 0.5, %v436
  %v438 = vsub.f32 1.5, %v437
  %v439 = vmul.f32 %v434, %v438
  %vm440 = vweird.f32 %v373
  %vm441 = vweird.f32 %v434
  %vm442 = vmor %vm440, %vm441
  %v443 = vsel %vm442, %v434, %v439
  %v444 = vrsqrt.pop %v374
  %v445 = vmul.f32 %v444, %v374
  %v446 = vmul.f32 %v445, %v444
  %v447 = vmul.f32 0.5, %v446
  %v448 = vsub.f32 1.5, %v447
  %v449 = vmul.f32 %v444, %v448
  %vm450 = vweird.f32 %v374
  %vm451 = vweird.f32 %v444
  %vm452 = vmor %vm450, %vm451
  %v453 = vsel %vm452, %v444, %v449
  %v454 = vrsqrt.pop %v375
  %v455 = vmul.f32 %v454, %v375
  %v456 = vmul.f32 %v455, %v454
  %v457 = vmul.f32 0.5, %v456
  %v458 = vsub.f32 1.5, %v457
  %v459 = vmul.f32 %v454, %v458
  %vm460 = vweird.f32 %v375
  %vm461 = vweird.f32 %v454
  %vm462 = vmor %vm460, %vm461
  %v463 = vsel %vm462, %v454, %v459
  %v464 = vrsqrt.pop %v376
  %v465 = vmul.f32 %v464, %v376
  %v466 = vmul.f32 %v465, %v464
  %v467 = vmul.f32 0.5, %v466
  %v468 = vsub.f32 1.5, %v467
  %v469 = vmul.f32 %v464, %v468
  %vm470 = vweird.f32 %v376
  %vm471 = vweird.f32 %v464
  %vm472 = vmor %vm470, %vm471
  %v473 = vsel %vm472, %v464, %v469
  %v474 = vrsqrt.pop %v377
  %v475 = vmul.f32 %v474, %v377
  %v476 = vmul.f32 %v475, %v474
  %v477 = vmul.f32 0.5, %v476
  %v478 = vsub.f32 1.5, %v477
  %v479 = vmul.f32 %v474, %v478
  %vm480 = vweird.f32 %v377
  %vm481 = vweird.f32 %v474
  %vm482 = vmor %vm480, %vm481
  %v483 = vsel %vm482, %v474, %v479
  %v484 = vrsqrt.pop %v378
  %v485 = vmul.f32 %v484, %v378
  %v486 = vmul.f32 %v485, %v484
  %v487 = vmul.f32 0.5, %v486
  %v488 = vsub.f32 1.5, %v487
  %v489 = vmul.f32 %v484, %v488
  %vm490 = vweird.f32 %v378
  %vm491 = vweird.f32 %v484
  %vm492 = vmor %vm490, %vm491
  %v493 = vsel %vm492, %v484, %v489
  %v494 = vrsqrt.pop %v379
  %v495 = vmul.f32 %v494, %v379
  %v496 = vmul.f32 %v495, %v494
  %v497 = vmul.f32 0.5, %v496
  %v498 = vsub.f32 1.5, %v497
  %v499 = vmul.f32 %v494, %v498
  %vm500 = vweird.f32 %v379
  %vm501 = vweird.f32 %v494
  %vm502 = vmor %vm500, %vm501
  %v503 = vsel %vm502, %v494, %v499
  %v504 = vrsqrt.pop %v380
  %v505 = vmul.f32 %v504, %v380
  %v506 = vmul.f32 %v505, %v504
  %v507 = vmul.f32 0.5, %v506
  %v508 = vsub.f32 1.5, %v507
  %v509 = vmul.f32 %v504, %v508
  %vm510 = vweird.f32 %v380
  %vm511 = vweird.f32 %v504
  %vm512 = vmor %vm510, %vm511
  %v513 = vsel %vm512, %v504, %v509
  %v514 = vrsqrt.pop %v381
  %v515 = vmul.f32 %v514, %v381
  %v516 = vmul.f32 %v515, %v514
  %v517 = vmul.f32 0.5, %v516
  %v518 = vsub.f32 1.5, %v517
  %v519 = vmul.f32 %v514, %v518
  %vm520 = vweird.f32 %v381
  %vm521 = vweird.f32 %v514
  %vm522 = vmor %vm520, %vm521
  %v523 = vsel %vm522, %v514, %v519
  %v524 = vrsqrt.pop %v382
  %v525 = vmul.f32 %v524, %v382
  %v526 = vmul.f32 %v525, %v524
  %v527 = vmul.f32 0.5, %v526
  %v528 = vsub.f32 1.5, %v527
  %v529 = vmul.f32 %v524, %v528
  %vm530 = vweird.f32 %v382
  %vm531 = vweird.f32 %v524
  %vm532 = vmor %vm530, %vm531
  %v533 = vsel %vm532, %v524, %v529
  %v534 = vrsqrt.pop %v383
  %v535 = vmul.f32 %v534, %v383
  %v536 = vmul.f32 %v535, %v534
  %v537 = vmul.f32 0.5, %v536
  %v538 = vsub.f32 1.5, %v537
  %v539 = vmul.f32 %v534, %v538
  %vm540 = vweird.f32 %v383
  %vm541 = vweird.f32 %v534
  %vm542 = vmor %vm540, %vm541
  %v543 = vsel %vm542, %v534, %v539
  %v544 = vmul.f32 %v272, %v393
  %v545 = vmul.f32 %v273, %v403
  %v546 = vmul.f32 %v274, %v413
  %v547 = vmul.f32 %v275, %v423
  %v548 = vmul.f32 %v276, %v433
  %v549 = vmul.f32 %v277, %v443
  %v550 = vmul.f32 %v278, %v453
  %v551 = vmul.f32 %v279, %v463
  %v552 = vmul.f32 %v280, %v473
  %v553 = vmul.f32 %v281, %v483
  %v554 = vmul.f32 %v282, %v493
  %v555 = vmul.f32 %v283, %v503
  %v556 = vmul.f32 %v284, %v513
  %v557 = vmul.f32 %v285, %v523
  %v558 = vmul.f32 %v286, %v533
  %v559 = vmul.f32 %v287, %v543
  %v560 = vld [vmem:[%s3] sm:$0x1]
  %v562 = vperm.slane %v560, 0
  %v564 = vmul.f32 %v544, %v562
  %v565 = vmul.f32 %v545, %v562
  %v566 = vmul.f32 %v546, %v562
  %v567 = vmul.f32 %v547, %v562
  %v568 = vmul.f32 %v548, %v562
  %v569 = vmul.f32 %v549, %v562
  %v570 = vmul.f32 %v550, %v562
  %v571 = vmul.f32 %v551, %v562
  %v572 = vmul.f32 %v552, %v562
  %v573 = vmul.f32 %v553, %v562
  %v574 = vmul.f32 %v554, %v562
  %v575 = vmul.f32 %v555, %v562
  %v576 = vmul.f32 %v556, %v562
  %v577 = vmul.f32 %v557, %v562
  %v578 = vmul.f32 %v558, %v562
  %v579 = vmul.f32 %v559, %v562
  %v580 = vld [vmem:[%s4] sm:$0x1]
  %v582 = vperm.slane %v580, 0
  %v584 = vadd.f32 %v564, %v582
  %v585 = vadd.f32 %v565, %v582
  %v586 = vadd.f32 %v566, %v582
  %v587 = vadd.f32 %v567, %v582
  %v588 = vadd.f32 %v568, %v582
  %v589 = vadd.f32 %v569, %v582
  %v590 = vadd.f32 %v570, %v582
  %v591 = vadd.f32 %v571, %v582
  %v592 = vadd.f32 %v572, %v582
  %v593 = vadd.f32 %v573, %v582
  %v594 = vadd.f32 %v574, %v582
  %v595 = vadd.f32 %v575, %v582
  %v596 = vadd.f32 %v576, %v582
  %v597 = vadd.f32 %v577, %v582
  %v598 = vadd.f32 %v578, %v582
  %v599 = vadd.f32 %v579, %v582
  %v600 = vpack.c.bf16 %v585, %v584
  %v601 = vpack.c.bf16 %v587, %v586
  %v602 = vpack.c.bf16 %v589, %v588
  %v603 = vpack.c.bf16 %v591, %v590
  %v604 = vpack.c.bf16 %v593, %v592
  %v605 = vpack.c.bf16 %v595, %v594
  %v606 = vpack.c.bf16 %v597, %v596
  %v607 = vpack.c.bf16 %v599, %v598
  %v608 = vld [vmem:[%s5] sm:$0xf]
  %v609 = vld [vmem:[%s5 + $0x4] sm:$0xf]
  %v610 = vld [vmem:[%s5 + $0x8] sm:$0xf]
  %v611 = vld [vmem:[%s5 + $0xc] sm:$0xf]
  %v612 = vld [vmem:[%s5 + $0x10] sm:$0xf]
  %v613 = vld [vmem:[%s5 + $0x14] sm:$0xf]
  %v614 = vld [vmem:[%s5 + $0x18] sm:$0xf]
  %v615 = vld [vmem:[%s5 + $0x1c] sm:$0xf]
  %v616 = vld [vmem:[%s5 + $0x20] sm:$0xf]
  %v617 = vld [vmem:[%s5 + $0x24] sm:$0xf]
  %v618 = vld [vmem:[%s5 + $0x28] sm:$0xf]
  %v619 = vld [vmem:[%s5 + $0x2c] sm:$0xf]
  %v620 = vld [vmem:[%s5 + $0x30] sm:$0x3]
  %v621 = vld [vmem:[%s6] sm:$0x1]
  %v623 = vperm.slane %v621, 0
  %v638 = vunpack.c.l.b16 %v608
  %v639 = vunpack.c.l.b16 %v609
  %v640 = vunpack.c.l.b16 %v610
  %v641 = vunpack.c.l.b16 %v611
  %v642 = vunpack.c.l.b16 %v612
  %v643 = vunpack.c.l.b16 %v613
  %v644 = vunpack.c.l.b16 %v614
  %v645 = vunpack.c.l.b16 %v615
  %v646 = vunpack.c.l.b16 %v616
  %v647 = vunpack.c.l.b16 %v617
  %v648 = vunpack.c.l.b16 %v618
  %v649 = vunpack.c.l.b16 %v619
  %v650 = vunpack.c.l.b16 %v620
  %v651 = vpack.c.b16 %v639, %v638
  %v652 = vpack.c.b16 %v641, %v640
  %v653 = vpack.c.b16 %v643, %v642
  %v654 = vpack.c.b16 %v645, %v644
  %v655 = vpack.c.b16 %v647, %v646
  %v656 = vpack.c.b16 %v649, %v648
  %v657 = vpack.c.b16 %v650, %v650
  %v665 = vsel %vm200, %v600, 0
  %v668 = vsel %vm200, %v601, 0
  %v671 = vsel %vm200, %v602, 0
  %v674 = vsel %vm200, %v603, 0
  %v677 = vsel %vm200, %v604, 0
  %v680 = vsel %vm200, %v605, 0
  %v683 = vsel %vm200, %v606, 0
  %v686 = vsel %vm200, %v607, 0
  %vm688 = vcmask 1041408
  %v690 = vsel %vm688, %v657, 0
  %692 = vmatpush.bf16.msra.mxu0 0
  %693 = vmatpush.bf16.msra.mxu0 %v690
  %694 = vmatpush.bf16.msra.mxu0 %v656
  %695 = vmatpush.bf16.msra.mxu0 %v655
  %696 = vmatpush.bf16.msra.mxu0 %v654
  %697 = vmatpush.bf16.msra.mxu0 %v653
  %698 = vmatpush.bf16.msra.mxu0 %v652
  %699 = vmatpush.bf16.msra.mxu0 %v651
  %700 = vmatmul.bf16.gmra.mxu0 %v665
  %v701 = vpop.f32.mrf.mxu0
  %v702 = vadd.f32 %v623, %v701
  %v703 = vpop.f32.mrf.mxu0
  %v704 = vadd.f32 %v623, %v703
  %705 = vmatmul.bf16.gmra.mxu0 %v668
  %v706 = vpop.f32.mrf.mxu0
  %v707 = vadd.f32 %v623, %v706
  %v708 = vpop.f32.mrf.mxu0
  %v709 = vadd.f32 %v623, %v708
  %710 = vmatmul.bf16.gmra.mxu0 %v671
  %v711 = vpop.f32.mrf.mxu0
  %v712 = vadd.f32 %v623, %v711
  %v713 = vpop.f32.mrf.mxu0
  %v714 = vadd.f32 %v623, %v713
  %715 = vmatmul.bf16.gmra.mxu0 %v674
  %v716 = vpop.f32.mrf.mxu0
  %v717 = vadd.f32 %v623, %v716
  %v718 = vpop.f32.mrf.mxu0
  %v719 = vadd.f32 %v623, %v718
  %720 = vmatmul.bf16.gmra.mxu0 %v677
  %v721 = vpop.f32.mrf.mxu0
  %v722 = vadd.f32 %v623, %v721
  %v723 = vpop.f32.mrf.mxu0
  %v724 = vadd.f32 %v623, %v723
  %725 = vmatmul.bf16.gmra.mxu0 %v680
  %v726 = vpop.f32.mrf.mxu0
  %v727 = vadd.f32 %v623, %v726
  %v728 = vpop.f32.mrf.mxu0
  %v729 = vadd.f32 %v623, %v728
  %730 = vmatmul.bf16.gmra.mxu0 %v683
  %v731 = vpop.f32.mrf.mxu0
  %v732 = vadd.f32 %v623, %v731
  %v733 = vpop.f32.mrf.mxu0
  %v734 = vadd.f32 %v623, %v733
  %735 = vmatmul.bf16.gmra.mxu0 %v686
  %v736 = vpop.f32.mrf.mxu0
  %v737 = vadd.f32 %v623, %v736
  %v738 = vpop.f32.mrf.mxu0
  %v739 = vadd.f32 %v623, %v738
  %740 = vdwg.mxu0
  %vm741 = vcmp.gt.f32.partialorder %v702, 0.0
  %vm742 = vcmp.gt.f32.partialorder %v704, 0.0
  %vm743 = vcmp.gt.f32.partialorder %v707, 0.0
  %vm744 = vcmp.gt.f32.partialorder %v709, 0.0
  %vm745 = vcmp.gt.f32.partialorder %v712, 0.0
  %vm746 = vcmp.gt.f32.partialorder %v714, 0.0
  %vm747 = vcmp.gt.f32.partialorder %v717, 0.0
  %vm748 = vcmp.gt.f32.partialorder %v719, 0.0
  %vm749 = vcmp.gt.f32.partialorder %v722, 0.0
  %vm750 = vcmp.gt.f32.partialorder %v724, 0.0
  %vm751 = vcmp.gt.f32.partialorder %v727, 0.0
  %vm752 = vcmp.gt.f32.partialorder %v729, 0.0
  %vm753 = vcmp.gt.f32.partialorder %v732, 0.0
  %vm754 = vcmp.gt.f32.partialorder %v734, 0.0
  %vm755 = vcmp.gt.f32.partialorder %v737, 0.0
  %vm756 = vcmp.gt.f32.partialorder %v739, 0.0
  %v757 = vmul.f32 %v702, 0.01
  %v758 = vmul.f32 %v704, 0.01
  %v759 = vmul.f32 %v707, 0.01
  %v760 = vmul.f32 %v709, 0.01
  %v761 = vmul.f32 %v712, 0.01
  %v762 = vmul.f32 %v714, 0.01
  %v763 = vmul.f32 %v717, 0.01
  %v764 = vmul.f32 %v719, 0.01
  %v765 = vmul.f32 %v722, 0.01
  %v766 = vmul.f32 %v724, 0.01
  %v767 = vmul.f32 %v727, 0.01
  %v768 = vmul.f32 %v729, 0.01
  %v769 = vmul.f32 %v732, 0.01
  %v770 = vmul.f32 %v734, 0.01
  %v771 = vmul.f32 %v737, 0.01
  %v772 = vmul.f32 %v739, 0.01
  %v773 = vsel %vm741, %v702, %v757
  %v774 = vsel %vm742, %v704, %v758
  %v775 = vsel %vm743, %v707, %v759
  %v776 = vsel %vm744, %v709, %v760
  %v777 = vsel %vm745, %v712, %v761
  %v778 = vsel %vm746, %v714, %v762
  %v779 = vsel %vm747, %v717, %v763
  %v780 = vsel %vm748, %v719, %v764
  %v781 = vsel %vm749, %v722, %v765
  %v782 = vsel %vm750, %v724, %v766
  %v783 = vsel %vm751, %v727, %v767
  %v784 = vsel %vm752, %v729, %v768
  %v785 = vsel %vm753, %v732, %v769
  %v786 = vsel %vm754, %v734, %v770
  %v787 = vsel %vm755, %v737, %v771
  %v788 = vsel %vm756, %v739, %v772
  %v789 = vsel %vm200, %v773, 0.0
  %790 = vadd.xlane.f32.xlu0 %v789
  %v791 = vpop.xlane.xlu0 %790
  %v792 = vsel %vm200, %v774, 0.0
  %793 = vadd.xlane.f32.xlu0 %v792
  %v794 = vpop.xlane.xlu0 %793
  %v795 = vsel %vm200, %v775, 0.0
  %796 = vadd.xlane.f32.xlu0 %v795
  %v797 = vpop.xlane.xlu0 %796
  %v798 = vsel %vm200, %v776, 0.0
  %799 = vadd.xlane.f32.xlu0 %v798
  %v800 = vpop.xlane.xlu0 %799
  %v801 = vsel %vm200, %v777, 0.0
  %802 = vadd.xlane.f32.xlu0 %v801
  %v803 = vpop.xlane.xlu0 %802
  %v804 = vsel %vm200, %v778, 0.0
  %805 = vadd.xlane.f32.xlu0 %v804
  %v806 = vpop.xlane.xlu0 %805
  %v807 = vsel %vm200, %v779, 0.0
  %808 = vadd.xlane.f32.xlu0 %v807
  %v809 = vpop.xlane.xlu0 %808
  %v810 = vsel %vm200, %v780, 0.0
  %811 = vadd.xlane.f32.xlu0 %v810
  %v812 = vpop.xlane.xlu0 %811
  %v813 = vsel %vm200, %v781, 0.0
  %814 = vadd.xlane.f32.xlu0 %v813
  %v815 = vpop.xlane.xlu0 %814
  %v816 = vsel %vm200, %v782, 0.0
  %817 = vadd.xlane.f32.xlu0 %v816
  %v818 = vpop.xlane.xlu0 %817
  %v819 = vsel %vm200, %v783, 0.0
  %820 = vadd.xlane.f32.xlu0 %v819
  %v821 = vpop.xlane.xlu0 %820
  %v822 = vsel %vm200, %v784, 0.0
  %823 = vadd.xlane.f32.xlu0 %v822
  %v824 = vpop.xlane.xlu0 %823
  %v825 = vsel %vm200, %v785, 0.0
  %826 = vadd.xlane.f32.xlu0 %v825
  %v827 = vpop.xlane.xlu0 %826
  %v828 = vsel %vm200, %v786, 0.0
  %829 = vadd.xlane.f32.xlu0 %v828
  %v830 = vpop.xlane.xlu0 %829
  %v831 = vsel %vm200, %v787, 0.0
  %832 = vadd.xlane.f32.xlu0 %v831
  %v833 = vpop.xlane.xlu0 %832
  %v834 = vsel %vm200, %v788, 0.0
  %835 = vadd.xlane.f32.xlu0 %v834
  %v836 = vpop.xlane.xlu0 %835
  %v837 = vmul.f32 %v791, %v255
  %v838 = vmul.f32 %v794, %v255
  %v839 = vmul.f32 %v797, %v255
  %v840 = vmul.f32 %v800, %v255
  %v841 = vmul.f32 %v803, %v255
  %v842 = vmul.f32 %v806, %v255
  %v843 = vmul.f32 %v809, %v255
  %v844 = vmul.f32 %v812, %v255
  %v845 = vmul.f32 %v815, %v255
  %v846 = vmul.f32 %v818, %v255
  %v847 = vmul.f32 %v821, %v255
  %v848 = vmul.f32 %v824, %v255
  %v849 = vmul.f32 %v827, %v255
  %v850 = vmul.f32 %v830, %v255
  %v851 = vmul.f32 %v833, %v255
  %v852 = vmul.f32 %v836, %v255
  %v853 = vsub.f32 %v773, %v837
  %v854 = vsub.f32 %v774, %v838
  %v855 = vsub.f32 %v775, %v839
  %v856 = vsub.f32 %v776, %v840
  %v857 = vsub.f32 %v777, %v841
  %v858 = vsub.f32 %v778, %v842
  %v859 = vsub.f32 %v779, %v843
  %v860 = vsub.f32 %v780, %v844
  %v861 = vsub.f32 %v781, %v845
  %v862 = vsub.f32 %v782, %v846
  %v863 = vsub.f32 %v783, %v847
  %v864 = vsub.f32 %v784, %v848
  %v865 = vsub.f32 %v785, %v849
  %v866 = vsub.f32 %v786, %v850
  %v867 = vsub.f32 %v787, %v851
  %v868 = vsub.f32 %v788, %v852
  %v869 = vmul.f32 %v853, %v853
  %v870 = vmul.f32 %v854, %v854
  %v871 = vmul.f32 %v855, %v855
  %v872 = vmul.f32 %v856, %v856
  %v873 = vmul.f32 %v857, %v857
  %v874 = vmul.f32 %v858, %v858
  %v875 = vmul.f32 %v859, %v859
  %v876 = vmul.f32 %v860, %v860
  %v877 = vmul.f32 %v861, %v861
  %v878 = vmul.f32 %v862, %v862
  %v879 = vmul.f32 %v863, %v863
  %v880 = vmul.f32 %v864, %v864
  %v881 = vmul.f32 %v865, %v865
  %v882 = vmul.f32 %v866, %v866
  %v883 = vmul.f32 %v867, %v867
  %v884 = vmul.f32 %v868, %v868
  %v885 = vsel %vm200, %v869, 0.0
  %886 = vadd.xlane.f32.xlu0 %v885
  %v887 = vpop.xlane.xlu0 %886
  %v888 = vsel %vm200, %v870, 0.0
  %889 = vadd.xlane.f32.xlu0 %v888
  %v890 = vpop.xlane.xlu0 %889
  %v891 = vsel %vm200, %v871, 0.0
  %892 = vadd.xlane.f32.xlu0 %v891
  %v893 = vpop.xlane.xlu0 %892
  %v894 = vsel %vm200, %v872, 0.0
  %895 = vadd.xlane.f32.xlu0 %v894
  %v896 = vpop.xlane.xlu0 %895
  %v897 = vsel %vm200, %v873, 0.0
  %898 = vadd.xlane.f32.xlu0 %v897
  %v899 = vpop.xlane.xlu0 %898
  %v900 = vsel %vm200, %v874, 0.0
  %901 = vadd.xlane.f32.xlu0 %v900
  %v902 = vpop.xlane.xlu0 %901
  %v903 = vsel %vm200, %v875, 0.0
  %904 = vadd.xlane.f32.xlu0 %v903
  %v905 = vpop.xlane.xlu0 %904
  %v906 = vsel %vm200, %v876, 0.0
  %907 = vadd.xlane.f32.xlu0 %v906
  %v908 = vpop.xlane.xlu0 %907
  %v909 = vsel %vm200, %v877, 0.0
  %910 = vadd.xlane.f32.xlu0 %v909
  %v911 = vpop.xlane.xlu0 %910
  %v912 = vsel %vm200, %v878, 0.0
  %913 = vadd.xlane.f32.xlu0 %v912
  %v914 = vpop.xlane.xlu0 %913
  %v915 = vsel %vm200, %v879, 0.0
  %916 = vadd.xlane.f32.xlu0 %v915
  %v917 = vpop.xlane.xlu0 %916
  %v918 = vsel %vm200, %v880, 0.0
  %919 = vadd.xlane.f32.xlu0 %v918
  %v920 = vpop.xlane.xlu0 %919
  %v921 = vsel %vm200, %v881, 0.0
  %922 = vadd.xlane.f32.xlu0 %v921
  %v923 = vpop.xlane.xlu0 %922
  %v924 = vsel %vm200, %v882, 0.0
  %925 = vadd.xlane.f32.xlu0 %v924
  %v926 = vpop.xlane.xlu0 %925
  %v927 = vsel %vm200, %v883, 0.0
  %928 = vadd.xlane.f32.xlu0 %v927
  %v929 = vpop.xlane.xlu0 %928
  %v930 = vsel %vm200, %v884, 0.0
  %931 = vadd.xlane.f32.xlu0 %v930
  %v932 = vpop.xlane.xlu0 %931
  %v933 = vmul.f32 %v887, %v255
  %v934 = vmul.f32 %v890, %v255
  %v935 = vmul.f32 %v893, %v255
  %v936 = vmul.f32 %v896, %v255
  %v937 = vmul.f32 %v899, %v255
  %v938 = vmul.f32 %v902, %v255
  %v939 = vmul.f32 %v905, %v255
  %v940 = vmul.f32 %v908, %v255
  %v941 = vmul.f32 %v911, %v255
  %v942 = vmul.f32 %v914, %v255
  %v943 = vmul.f32 %v917, %v255
  %v944 = vmul.f32 %v920, %v255
  %v945 = vmul.f32 %v923, %v255
  %v946 = vmul.f32 %v926, %v255
  %v947 = vmul.f32 %v929, %v255
  %v948 = vmul.f32 %v932, %v255
  %v949 = vadd.f32 %v933, 1e-05
  %v950 = vadd.f32 %v934, 1e-05
  %v951 = vadd.f32 %v935, 1e-05
  %v952 = vadd.f32 %v936, 1e-05
  %v953 = vadd.f32 %v937, 1e-05
  %v954 = vadd.f32 %v938, 1e-05
  %v955 = vadd.f32 %v939, 1e-05
  %v956 = vadd.f32 %v940, 1e-05
  %v957 = vadd.f32 %v941, 1e-05
  %v958 = vadd.f32 %v942, 1e-05
  %v959 = vadd.f32 %v943, 1e-05
  %v960 = vadd.f32 %v944, 1e-05
  %v961 = vadd.f32 %v945, 1e-05
  %v962 = vadd.f32 %v946, 1e-05
  %v963 = vadd.f32 %v947, 1e-05
  %v964 = vadd.f32 %v948, 1e-05
  %v965 = vrsqrt.pop %v949
  %v966 = vmul.f32 %v965, %v949
  %v967 = vmul.f32 %v966, %v965
  %v968 = vmul.f32 0.5, %v967
  %v969 = vsub.f32 1.5, %v968
  %v970 = vmul.f32 %v965, %v969
  %vm971 = vweird.f32 %v949
  %vm972 = vweird.f32 %v965
  %vm973 = vmor %vm971, %vm972
  %v974 = vsel %vm973, %v965, %v970
  %v975 = vrsqrt.pop %v950
  %v976 = vmul.f32 %v975, %v950
  %v977 = vmul.f32 %v976, %v975
  %v978 = vmul.f32 0.5, %v977
  %v979 = vsub.f32 1.5, %v978
  %v980 = vmul.f32 %v975, %v979
  %vm981 = vweird.f32 %v950
  %vm982 = vweird.f32 %v975
  %vm983 = vmor %vm981, %vm982
  %v984 = vsel %vm983, %v975, %v980
  %v985 = vrsqrt.pop %v951
  %v986 = vmul.f32 %v985, %v951
  %v987 = vmul.f32 %v986, %v985
  %v988 = vmul.f32 0.5, %v987
  %v989 = vsub.f32 1.5, %v988
  %v990 = vmul.f32 %v985, %v989
  %vm991 = vweird.f32 %v951
  %vm992 = vweird.f32 %v985
  %vm993 = vmor %vm991, %vm992
  %v994 = vsel %vm993, %v985, %v990
  %v995 = vrsqrt.pop %v952
  %v996 = vmul.f32 %v995, %v952
  %v997 = vmul.f32 %v996, %v995
  %v998 = vmul.f32 0.5, %v997
  %v999 = vsub.f32 1.5, %v998
  %v1000 = vmul.f32 %v995, %v999
  %vm1001 = vweird.f32 %v952
  %vm1002 = vweird.f32 %v995
  %vm1003 = vmor %vm1001, %vm1002
  %v1004 = vsel %vm1003, %v995, %v1000
  %v1005 = vrsqrt.pop %v953
  %v1006 = vmul.f32 %v1005, %v953
  %v1007 = vmul.f32 %v1006, %v1005
  %v1008 = vmul.f32 0.5, %v1007
  %v1009 = vsub.f32 1.5, %v1008
  %v1010 = vmul.f32 %v1005, %v1009
  %vm1011 = vweird.f32 %v953
  %vm1012 = vweird.f32 %v1005
  %vm1013 = vmor %vm1011, %vm1012
  %v1014 = vsel %vm1013, %v1005, %v1010
  %v1015 = vrsqrt.pop %v954
  %v1016 = vmul.f32 %v1015, %v954
  %v1017 = vmul.f32 %v1016, %v1015
  %v1018 = vmul.f32 0.5, %v1017
  %v1019 = vsub.f32 1.5, %v1018
  %v1020 = vmul.f32 %v1015, %v1019
  %vm1021 = vweird.f32 %v954
  %vm1022 = vweird.f32 %v1015
  %vm1023 = vmor %vm1021, %vm1022
  %v1024 = vsel %vm1023, %v1015, %v1020
  %v1025 = vrsqrt.pop %v955
  %v1026 = vmul.f32 %v1025, %v955
  %v1027 = vmul.f32 %v1026, %v1025
  %v1028 = vmul.f32 0.5, %v1027
  %v1029 = vsub.f32 1.5, %v1028
  %v1030 = vmul.f32 %v1025, %v1029
  %vm1031 = vweird.f32 %v955
  %vm1032 = vweird.f32 %v1025
  %vm1033 = vmor %vm1031, %vm1032
  %v1034 = vsel %vm1033, %v1025, %v1030
  %v1035 = vrsqrt.pop %v956
  %v1036 = vmul.f32 %v1035, %v956
  %v1037 = vmul.f32 %v1036, %v1035
  %v1038 = vmul.f32 0.5, %v1037
  %v1039 = vsub.f32 1.5, %v1038
  %v1040 = vmul.f32 %v1035, %v1039
  %vm1041 = vweird.f32 %v956
  %vm1042 = vweird.f32 %v1035
  %vm1043 = vmor %vm1041, %vm1042
  %v1044 = vsel %vm1043, %v1035, %v1040
  %v1045 = vrsqrt.pop %v957
  %v1046 = vmul.f32 %v1045, %v957
  %v1047 = vmul.f32 %v1046, %v1045
  %v1048 = vmul.f32 0.5, %v1047
  %v1049 = vsub.f32 1.5, %v1048
  %v1050 = vmul.f32 %v1045, %v1049
  %vm1051 = vweird.f32 %v957
  %vm1052 = vweird.f32 %v1045
  %vm1053 = vmor %vm1051, %vm1052
  %v1054 = vsel %vm1053, %v1045, %v1050
  %v1055 = vrsqrt.pop %v958
  %v1056 = vmul.f32 %v1055, %v958
  %v1057 = vmul.f32 %v1056, %v1055
  %v1058 = vmul.f32 0.5, %v1057
  %v1059 = vsub.f32 1.5, %v1058
  %v1060 = vmul.f32 %v1055, %v1059
  %vm1061 = vweird.f32 %v958
  %vm1062 = vweird.f32 %v1055
  %vm1063 = vmor %vm1061, %vm1062
  %v1064 = vsel %vm1063, %v1055, %v1060
  %v1065 = vrsqrt.pop %v959
  %v1066 = vmul.f32 %v1065, %v959
  %v1067 = vmul.f32 %v1066, %v1065
  %v1068 = vmul.f32 0.5, %v1067
  %v1069 = vsub.f32 1.5, %v1068
  %v1070 = vmul.f32 %v1065, %v1069
  %vm1071 = vweird.f32 %v959
  %vm1072 = vweird.f32 %v1065
  %vm1073 = vmor %vm1071, %vm1072
  %v1074 = vsel %vm1073, %v1065, %v1070
  %v1075 = vrsqrt.pop %v960
  %v1076 = vmul.f32 %v1075, %v960
  %v1077 = vmul.f32 %v1076, %v1075
  %v1078 = vmul.f32 0.5, %v1077
  %v1079 = vsub.f32 1.5, %v1078
  %v1080 = vmul.f32 %v1075, %v1079
  %vm1081 = vweird.f32 %v960
  %vm1082 = vweird.f32 %v1075
  %vm1083 = vmor %vm1081, %vm1082
  %v1084 = vsel %vm1083, %v1075, %v1080
  %v1085 = vrsqrt.pop %v961
  %v1086 = vmul.f32 %v1085, %v961
  %v1087 = vmul.f32 %v1086, %v1085
  %v1088 = vmul.f32 0.5, %v1087
  %v1089 = vsub.f32 1.5, %v1088
  %v1090 = vmul.f32 %v1085, %v1089
  %vm1091 = vweird.f32 %v961
  %vm1092 = vweird.f32 %v1085
  %vm1093 = vmor %vm1091, %vm1092
  %v1094 = vsel %vm1093, %v1085, %v1090
  %v1095 = vrsqrt.pop %v962
  %v1096 = vmul.f32 %v1095, %v962
  %v1097 = vmul.f32 %v1096, %v1095
  %v1098 = vmul.f32 0.5, %v1097
  %v1099 = vsub.f32 1.5, %v1098
  %v1100 = vmul.f32 %v1095, %v1099
  %vm1101 = vweird.f32 %v962
  %vm1102 = vweird.f32 %v1095
  %vm1103 = vmor %vm1101, %vm1102
  %v1104 = vsel %vm1103, %v1095, %v1100
  %v1105 = vrsqrt.pop %v963
  %v1106 = vmul.f32 %v1105, %v963
  %v1107 = vmul.f32 %v1106, %v1105
  %v1108 = vmul.f32 0.5, %v1107
  %v1109 = vsub.f32 1.5, %v1108
  %v1110 = vmul.f32 %v1105, %v1109
  %vm1111 = vweird.f32 %v963
  %vm1112 = vweird.f32 %v1105
  %vm1113 = vmor %vm1111, %vm1112
  %v1114 = vsel %vm1113, %v1105, %v1110
  %v1115 = vrsqrt.pop %v964
  %v1116 = vmul.f32 %v1115, %v964
  %v1117 = vmul.f32 %v1116, %v1115
  %v1118 = vmul.f32 0.5, %v1117
  %v1119 = vsub.f32 1.5, %v1118
  %v1120 = vmul.f32 %v1115, %v1119
  %vm1121 = vweird.f32 %v964
  %vm1122 = vweird.f32 %v1115
  %vm1123 = vmor %vm1121, %vm1122
  %v1124 = vsel %vm1123, %v1115, %v1120
  %v1125 = vmul.f32 %v853, %v974
  %v1126 = vmul.f32 %v854, %v984
  %v1127 = vmul.f32 %v855, %v994
  %v1128 = vmul.f32 %v856, %v1004
  %v1129 = vmul.f32 %v857, %v1014
  %v1130 = vmul.f32 %v858, %v1024
  %v1131 = vmul.f32 %v859, %v1034
  %v1132 = vmul.f32 %v860, %v1044
  %v1133 = vmul.f32 %v861, %v1054
  %v1134 = vmul.f32 %v862, %v1064
  %v1135 = vmul.f32 %v863, %v1074
  %v1136 = vmul.f32 %v864, %v1084
  %v1137 = vmul.f32 %v865, %v1094
  %v1138 = vmul.f32 %v866, %v1104
  %v1139 = vmul.f32 %v867, %v1114
  %v1140 = vmul.f32 %v868, %v1124
  %v1141 = vld [vmem:[%s7] sm:$0x1]
  %s1142 = sld [smem:[#allocation2]]
  %v1143 = vstv %s1142
  %v1145 = vsel %vm200, %v1141, 0
  %v1148 = vsel %vm200, %v1125, 0
  %v1151 = vsel %vm200, %v1126, 0
  %v1154 = vsel %vm200, %v1127, 0
  %v1157 = vsel %vm200, %v1128, 0
  %v1160 = vsel %vm200, %v1129, 0
  %v1163 = vsel %vm200, %v1130, 0
  %v1166 = vsel %vm200, %v1131, 0
  %v1169 = vsel %vm200, %v1132, 0
  %v1172 = vsel %vm200, %v1133, 0
  %v1175 = vsel %vm200, %v1134, 0
  %v1178 = vsel %vm200, %v1135, 0
  %v1181 = vsel %vm200, %v1136, 0
  %v1184 = vsel %vm200, %v1137, 0
  %v1187 = vsel %vm200, %v1138, 0
  %v1190 = vsel %vm200, %v1139, 0
  %v1193 = vsel %vm200, %v1140, 0
  %1195 = vmatpush.xpose.msra.mxu0 %v1193
  %1196 = vmatpush.xpose.msra.mxu0 %v1190
  %1197 = vmatpush.xpose.msra.mxu0 %v1187
  %1198 = vmatpush.xpose.msra.mxu0 %v1184
  %1199 = vmatpush.xpose.msra.mxu0 %v1181
  %1200 = vmatpush.xpose.msra.mxu0 %v1178
  %1201 = vmatpush.xpose.msra.mxu0 %v1175
  %1202 = vmatpush.xpose.msra.mxu0 %v1172
  %1203 = vmatpush.xpose.msra.mxu0 %v1169
  %1204 = vmatpush.xpose.msra.mxu0 %v1166
  %1205 = vmatpush.xpose.msra.mxu0 %v1163
  %1206 = vmatpush.xpose.msra.mxu0 %v1160
  %1207 = vmatpush.xpose.msra.mxu0 %v1157
  %1208 = vmatpush.xpose.msra.mxu0 %v1154
  %1209 = vmatpush.xpose.msra.mxu0 %v1151
  %1210 = vmatpush.xpose.msra.mxu0 %v1148
  %1211 = vmatmul.f32.gmra.mxu0 %v1145
  %v1212 = vpop.f32.mrf.mxu0
  %v1213 = vadd.f32 %v1143, %v1212
  %1214 = vdwg.mxu0
  %1215 = vst [vmem:[%s9] sm:$0x1] %v1213
  // Predicated region
  $region38: #{rt_nw_forward.1} parent=0 // pred_check
    _
  $region39: #{rt_nw_forward.1} parent=0 // pred_check_branch
    %1217 = sbr.rel (0) target = $region41
  $region40: #{rt_nw_forward.1} parent=0 // pred_region
    _
  $region41: #{rt_nw_forward.1} parent=0 // pred_fallthru
    _
  // Predicated region
  $region42: #{rt_nw_forward.1} parent=0 // pred_check
    _
  $region43: #{rt_nw_forward.1} parent=0 // pred_check_branch
    %1219 = sbr.rel (0) target = $region45
  $region44: #{rt_nw_forward.1} parent=0 // pred_region
    _
  $region45: #{rt_nw_forward.1} parent=0 // pred_fallthru
    _

</llo_original>
